<compile_context>
chip_gen: v7x
topology: tpu7x:2x2x1
jax: 0.10.0
libtpu: 0.0.40
codegen_flags: <defaults>
</compile_context>

<pallas_src>
import functools

import jax
import jax.numpy as jnp
import numpy as np
from jax.experimental import pallas as pl
from jax.experimental.pallas import tpu as pltpu


def _round_up(x: int, m: int) -> int:
    return (x + m - 1) // m * m


# ----------------------------- Pallas kernel --------------------------------
def _reweighting_kernel(
    sr_asp_ref,   # (1, 2H)    [sentence_representation | aspect_embedding]
    emb_ref,      # (S, H)     this batch row's sentence embeddings
    mask_ref,     # (S, 1)     attention mask (float)
    wA_ref,       # (2H, H)    [[wd], [wa]]
    whs_ref,      # (H, GP)    whs, gate dim zero-padded to GP lanes
    ws_ref,       # (H, H)
    w_col_ref,    # (H, 1)     attention vector
    wi_ref,       # (H, 3GP)   GRU input->hidden weights  [r | z | n], padded
    wh_ref,       # (GP, 3GP)  GRU hidden->hidden weights [r | z | n], padded
    out_ref,      # (1, GP)    new sentence_representation (padded)
    *,
    lambda_m: float, H: int, GP: int,
):
    f32 = jnp.float32
    sra = sr_asp_ref[...]                                                  # (1, 2H)
    emb = emb_ref[...]                                                     # (S, H)
    mask = mask_ref[...]                                                   # (S, 1)

    # A = sr @ wd + asp @ wa (one MXU push on the packed operands).
    A = jnp.dot(sra, wA_ref[...], preferred_element_type=f32)             # (1, H)
    # h0 = sr @ whs (separate tiny matmul; no zero block in the packed weight).
    h0 = jnp.dot(sra[:, :H], whs_ref[...], preferred_element_type=f32)    # (1, GP)

    # ---- attention scores over the sequence ----
    s_proj = jnp.dot(emb, ws_ref[...], preferred_element_type=f32)        # (S, H)
    m_col = jnp.dot(jnp.tanh(s_proj + A), w_col_ref[...],
                    preferred_element_type=f32)                           # (S, 1)

    # softmax over the sequence axis (unmasked — matches the PyTorch module)
    logits = lambda_m * m_col
    logits = logits - jnp.max(logits, axis=0, keepdims=True)
    e = jnp.exp(logits)
    p = e * (1.0 / jnp.sum(e, axis=0, keepdims=True))                     # (S, 1)

    # ---- masked mean pooling: per-batch weighted sum + sublane reduce ----
    pm = p * mask                                                         # (S, 1)
    pooled = jnp.sum(pm * emb, axis=0, keepdims=True)                     # (1, H)
    at = pooled * (1.0 / jnp.sum(mask, axis=0, keepdims=True))            # (1, H)

    # ---- fused single-step GRU (bias=False, gate order r, z, n) ----
    gi = jnp.dot(at, wi_ref[...], preferred_element_type=f32)             # (1, 3GP)
    gh = jnp.dot(h0, wh_ref[...], preferred_element_type=f32)             # (1, 3GP)
    r = jax.nn.sigmoid(gi[:, :GP] + gh[:, :GP])                           # lane-aligned
    z = jax.nn.sigmoid(gi[:, GP:2 * GP] + gh[:, GP:2 * GP])
    n = jnp.tanh(gi[:, 2 * GP:] + r * gh[:, 2 * GP:])
    out_ref[...] = ((1.0 - z) * n + z * h0).astype(out_ref.dtype)


# ------------------------------ wrapper --------------------------------------
def make_reweighting_fn(params, *, lambda_m: float = 1.0):
    """Packs / pads the weights ONCE and returns a jitted forward function.

    Returned fn: (sr (B,H), asp (B,H), emb (B,S,H), mask (B,S)) -> (B, G).
    """
    f32 = jnp.float32
    H = params["ws"].shape[0]
    G = params["whs"].shape[1]
    GP = _round_up(G, 128)                    # lane-aligned gate width

    def pad_cols(w):
        w = jnp.asarray(w, f32)
        return jnp.pad(w, ((0, 0), (0, GP - w.shape[1])))

    def pad_both(w):
        w = jnp.asarray(w, f32)
        return jnp.pad(w, ((0, GP - w.shape[0]), (0, GP - w.shape[1])))

    # --- one-time weight packing (hoisted out of the per-call path) ---
    wA = jnp.concatenate([params["wd"], params["wa"]], axis=0).astype(f32)      # (2H, H)
    whs_p = pad_cols(params["whs"])                                             # (H, GP)
    wi_p = jnp.concatenate([pad_cols(params["w_ir"]),
                            pad_cols(params["w_iz"]),
                            pad_cols(params["w_in"])], axis=1)                  # (H, 3GP)
    wh_p = jnp.concatenate([pad_both(params["w_hr"]),
                            pad_both(params["w_hz"]),
                            pad_both(params["w_hn"])], axis=1)                  # (GP, 3GP)
    ws = jnp.asarray(params["ws"], f32)                                         # (H, H)
    w_col = jnp.asarray(params["w"], f32).reshape(H, 1)                         # (H, 1)

    kernel = functools.partial(_reweighting_kernel,
                               lambda_m=float(lambda_m), H=H, GP=GP)

    @jax.jit
    def forward(sr, asp, emb, mask):
        B, S, _ = emb.shape
        # Only the data-dependent packing happens per call.
        sr_asp = jnp.concatenate([sr, asp], axis=1).reshape(B, 1, 2 * H).astype(f32)
        mask3 = mask.reshape(B, S, 1).astype(f32)

        out = pl.pallas_call(
            kernel,
            out_shape=jax.ShapeDtypeStruct((B, 1, GP), f32),
            grid=(B,),
            in_specs=[
                # per-batch tiles (leading batch dim squeezed away in-kernel)
                pl.BlockSpec((None, 1, 2 * H), lambda i: (i, 0, 0)),   # sr_asp
                pl.BlockSpec((None, S, H), lambda i: (i, 0, 0)),       # emb
                pl.BlockSpec((None, S, 1), lambda i: (i, 0, 0)),       # mask
                # weights: constant index maps -> DMA'd once, VMEM-resident
                pl.BlockSpec((2 * H, H), lambda i: (0, 0)),            # wA
                pl.BlockSpec((H, GP), lambda i: (0, 0)),               # whs
                pl.BlockSpec((H, H), lambda i: (0, 0)),                # ws
                pl.BlockSpec((H, 1), lambda i: (0, 0)),                # w
                pl.BlockSpec((H, 3 * GP), lambda i: (0, 0)),           # wi
                pl.BlockSpec((GP, 3 * GP), lambda i: (0, 0)),          # wh
            ],
            out_specs=pl.BlockSpec((None, 1, GP), lambda i: (i, 0, 0)),
            compiler_params=pltpu.CompilerParams(
                dimension_semantics=("parallel",)),
        )(sr_asp, emb.astype(f32), mask3, wA, whs_p, ws, w_col, wi_p, wh_p)

        return out[:, 0, :G]

    return forward


# ------------------------- pure-JAX reference --------------------------------
def reweighting_reference(sr, asp, emb, mask, params, *, lambda_m=1.0):
    A = sr @ params["wd"] + asp @ params["wa"]
    S = jnp.einsum("bsh,hk->bsk", emb, params["ws"])
    M = S + A[:, None, :]
    m = jnp.tanh(M) @ params["w"]
    p = jax.nn.softmax(lambda_m * m, axis=-1)
    rw = p[..., None] * emb
    at = jnp.sum(rw * mask[..., None], axis=1) / jnp.sum(mask, axis=-1, keepdims=True)
    h0 = sr @ params["whs"]
    r = jax.nn.sigmoid(at @ params["w_ir"] + h0 @ params["w_hr"])
    z = jax.nn.sigmoid(at @ params["w_iz"] + h0 @ params["w_hz"])
    n = jnp.tanh(at @ params["w_in"] + r * (h0 @ params["w_hn"]))
    return (1.0 - z) * n + z * h0


# --------------------------------- main ---------------------------------------
if __name__ == "__main__":
    B, S, H, G = 2, 8, 32, 32          # batch, seq_len, hidden_size, gru_hidden_size
    LAMBDA_M = 1.0
    INIT_STD = 0.001

    key = jax.random.PRNGKey(0)
    keys = jax.random.split(key, 16)

    # inputs
    sr = jax.random.normal(keys[0], (B, H), jnp.float32)       # sentence_representation
    asp = jax.random.normal(keys[1], (B, H), jnp.float32)      # aspect_embedding
    emb = jax.random.normal(keys[2], (B, S, H), jnp.float32)   # sentence_embeddings
    mask = jnp.concatenate(
        [jnp.ones((B, S // 2), jnp.float32),
         jnp.array([[1.0] * (S // 2), [0.0] * (S // 2)], jnp.float32)], axis=1
    )                                                           # attention_mask (B, S)

    # parameters (deterministic, matching __init__ shapes, first_layer=True)
    def nrm(k, shape):
        return INIT_STD * jax.random.normal(k, shape, jnp.float32)

    params = {
        "ws": nrm(keys[3], (H, H)),
        "wd": nrm(keys[4], (H, H)),
        "wa": nrm(keys[5], (H, H)),
        "whs": nrm(keys[6], (H, G)),
        "w": nrm(keys[7], (H,)),
        # GRU (bias=False) weights, stored input-major so x @ W works directly
        "w_ir": nrm(keys[8], (H, G)),
        "w_iz": nrm(keys[9], (H, G)),
        "w_in": nrm(keys[10], (H, G)),
        "w_hr": nrm(keys[11], (G, G)),
        "w_hz": nrm(keys[12], (G, G)),
        "w_hn": nrm(keys[13], (G, G)),
    }

    reweighting_forward = make_reweighting_fn(params, lambda_m=LAMBDA_M)

    out = reweighting_forward(sr, asp, emb, mask)
    out = jax.block_until_ready(out)

    ref = reweighting_reference(sr, asp, emb, mask, params, lambda_m=LAMBDA_M)
    np.testing.assert_allclose(np.asarray(out), np.asarray(ref), rtol=1e-5, atol=1e-5)

    print("KERNEL_OK")
</pallas_src>

<mosaic_0001>
module attributes {stable_mosaic.version = 11 : i64} {
  func.func @_reweighting_kernel(%arg0: i32, %arg1: memref<1x1x64xf32, #tpu.memory_space<vmem>>, %arg2: memref<1x8x32xf32, #tpu.memory_space<vmem>>, %arg3: memref<1x8x1xf32, #tpu.memory_space<vmem>>, %arg4: memref<64x32xf32, #tpu.memory_space<vmem>>, %arg5: memref<32x128xf32, #tpu.memory_space<vmem>>, %arg6: memref<32x32xf32, #tpu.memory_space<vmem>>, %arg7: memref<32x1xf32, #tpu.memory_space<vmem>>, %arg8: memref<32x384xf32, #tpu.memory_space<vmem>>, %arg9: memref<128x384xf32, #tpu.memory_space<vmem>>, %arg10: memref<1x1x128xf32, #tpu.memory_space<vmem>>) attributes {dimension_semantics = [#tpu.dimension_semantics<parallel>], iteration_bounds = array<i64: 2>, scalar_prefetch = 0 : i64, scratch_operands = 0 : i64, tpu.core_type = #tpu.core_type<tc>, window_params = [{transform_indices = @transform_0, window_bounds = array<i64: 1, 1, 64>}, {transform_indices = @transform_1, window_bounds = array<i64: 1, 8, 32>}, {transform_indices = @transform_2, window_bounds = array<i64: 1, 8, 1>}, {pipeline_mode = #tpu.pipeline_mode<synchronous>, transform_indices = @transform_3, window_bounds = array<i64: 64, 32>}, {pipeline_mode = #tpu.pipeline_mode<synchronous>, transform_indices = @transform_4, window_bounds = array<i64: 32, 128>}, {pipeline_mode = #tpu.pipeline_mode<synchronous>, transform_indices = @transform_5, window_bounds = array<i64: 32, 32>}, {pipeline_mode = #tpu.pipeline_mode<synchronous>, transform_indices = @transform_6, window_bounds = array<i64: 32, 1>}, {pipeline_mode = #tpu.pipeline_mode<synchronous>, transform_indices = @transform_7, window_bounds = array<i64: 32, 384>}, {pipeline_mode = #tpu.pipeline_mode<synchronous>, transform_indices = @transform_8, window_bounds = array<i64: 128, 384>}, {transform_indices = @transform_9, window_bounds = array<i64: 1, 1, 128>}]} {
    %c0 = arith.constant 0 : index
    %c0_0 = arith.constant 0 : index
    %c0_1 = arith.constant 0 : index
    %0 = vector.load %arg1[%c0, %c0_0, %c0_1] : memref<1x1x64xf32, #tpu.memory_space<vmem>>, vector<1x1x64xf32>
    %1 = vector.shape_cast %0 : vector<1x1x64xf32> to vector<1x64xf32>
    %c0_2 = arith.constant 0 : index
    %c0_3 = arith.constant 0 : index
    %c0_4 = arith.constant 0 : index
    %2 = vector.load %arg2[%c0_2, %c0_3, %c0_4] : memref<1x8x32xf32, #tpu.memory_space<vmem>>, vector<1x8x32xf32>
    %3 = vector.shape_cast %2 : vector<1x8x32xf32> to vector<8x32xf32>
    %c0_5 = arith.constant 0 : index
    %c0_6 = arith.constant 0 : index
    %c0_7 = arith.constant 0 : index
    %4 = vector.load %arg3[%c0_5, %c0_6, %c0_7] : memref<1x8x1xf32, #tpu.memory_space<vmem>>, vector<1x8x1xf32>
    %5 = vector.shape_cast %4 : vector<1x8x1xf32> to vector<8x1xf32>
    %c0_8 = arith.constant 0 : index
    %c0_9 = arith.constant 0 : index
    %6 = vector.load %arg4[%c0_8, %c0_9] : memref<64x32xf32, #tpu.memory_space<vmem>>, vector<64x32xf32>
    %cst = arith.constant dense<0.000000e+00> : vector<1x32xf32>
    %7 = tpu.matmul %1, %6, %cst {dimension_numbers = #tpu.dot_dimension_numbers<[1], [0], [0], [1], [0, 0, 1, 1], [], []>} : vector<1x64xf32>, vector<64x32xf32>, vector<1x32xf32> -> vector<1x32xf32>
    %8 = vector.extract_strided_slice %1 {offsets = [0, 0], sizes = [1, 32], strides = [1, 1]} : vector<1x64xf32> to vector<1x32xf32>
    %c0_10 = arith.constant 0 : index
    %c0_11 = arith.constant 0 : index
    %9 = vector.load %arg5[%c0_10, %c0_11] : memref<32x128xf32, #tpu.memory_space<vmem>>, vector<32x128xf32>
    %cst_12 = arith.constant dense<0.000000e+00> : vector<1x128xf32>
    %10 = tpu.matmul %8, %9, %cst_12 {dimension_numbers = #tpu.dot_dimension_numbers<[1], [0], [0], [1], [0, 0, 1, 1], [], []>} : vector<1x32xf32>, vector<32x128xf32>, vector<1x128xf32> -> vector<1x128xf32>
    %c0_13 = arith.constant 0 : index
    %c0_14 = arith.constant 0 : index
    %11 = vector.load %arg6[%c0_13, %c0_14] : memref<32x32xf32, #tpu.memory_space<vmem>>, vector<32x32xf32>
    %cst_15 = arith.constant dense<0.000000e+00> : vector<8x32xf32>
    %12 = tpu.matmul %3, %11, %cst_15 {dimension_numbers = #tpu.dot_dimension_numbers<[1], [0], [0], [1], [0, 0, 1, 1], [], []>} : vector<8x32xf32>, vector<32x32xf32>, vector<8x32xf32> -> vector<8x32xf32>
    %13 = vector.broadcast %7 : vector<1x32xf32> to vector<8x32xf32>
    %14 = arith.addf %12, %13 : vector<8x32xf32>
    %15 = math.tanh %14 : vector<8x32xf32>
    %c0_16 = arith.constant 0 : index
    %c0_17 = arith.constant 0 : index
    %16 = vector.load %arg7[%c0_16, %c0_17] : memref<32x1xf32, #tpu.memory_space<vmem>>, vector<32x1xf32>
    %cst_18 = arith.constant dense<0.000000e+00> : vector<8x1xf32>
    %17 = tpu.matmul %15, %16, %cst_18 {dimension_numbers = #tpu.dot_dimension_numbers<[1], [0], [0], [1], [0, 0, 1, 1], [], []>} : vector<8x32xf32>, vector<32x1xf32>, vector<8x1xf32> -> vector<8x1xf32>
    %cst_19 = arith.constant 1.000000e+00 : f32
    %18 = vector.broadcast %cst_19 : f32 to vector<8x1xf32>
    %19 = arith.mulf %18, %17 : vector<8x1xf32>
    %cst_20 = arith.constant dense<0xFF800000> : vector<1xf32>
    %20 = vector.multi_reduction <maximumf>, %19, %cst_20 [0] : vector<8x1xf32> to vector<1xf32>
    %21 = vector.shape_cast %20 : vector<1xf32> to vector<1x1xf32>
    %22 = vector.broadcast %21 : vector<1x1xf32> to vector<8x1xf32>
    %23 = arith.subf %19, %22 : vector<8x1xf32>
    %24 = math.exp %23 : vector<8x1xf32>
    %cst_21 = arith.constant dense<0.000000e+00> : vector<1xf32>
    %25 = vector.multi_reduction <add>, %24, %cst_21 [0] : vector<8x1xf32> to vector<1xf32>
    %26 = vector.shape_cast %25 : vector<1xf32> to vector<1x1xf32>
    %cst_22 = arith.constant 1.000000e+00 : f32
    %27 = vector.broadcast %cst_22 : f32 to vector<1x1xf32>
    %28 = arith.divf %27, %26 : vector<1x1xf32>
    %29 = vector.broadcast %28 : vector<1x1xf32> to vector<8x1xf32>
    %30 = arith.mulf %24, %29 : vector<8x1xf32>
    %31 = arith.mulf %30, %5 : vector<8x1xf32>
    %32 = vector.broadcast %31 : vector<8x1xf32> to vector<8x32xf32>
    %33 = arith.mulf %32, %3 : vector<8x32xf32>
    %cst_23 = arith.constant dense<0.000000e+00> : vector<32xf32>
    %34 = vector.multi_reduction <add>, %33, %cst_23 [0] : vector<8x32xf32> to vector<32xf32>
    %35 = vector.shape_cast %34 : vector<32xf32> to vector<1x32xf32>
    %cst_24 = arith.constant dense<0.000000e+00> : vector<1xf32>
    %36 = vector.multi_reduction <add>, %5, %cst_24 [0] : vector<8x1xf32> to vector<1xf32>
    %37 = vector.shape_cast %36 : vector<1xf32> to vector<1x1xf32>
    %cst_25 = arith.constant 1.000000e+00 : f32
    %38 = vector.broadcast %cst_25 : f32 to vector<1x1xf32>
    %39 = arith.divf %38, %37 : vector<1x1xf32>
    %40 = vector.broadcast %39 : vector<1x1xf32> to vector<1x32xf32>
    %41 = arith.mulf %35, %40 : vector<1x32xf32>
    %c0_26 = arith.constant 0 : index
    %c0_27 = arith.constant 0 : index
    %42 = vector.load %arg8[%c0_26, %c0_27] : memref<32x384xf32, #tpu.memory_space<vmem>>, vector<32x384xf32>
    %cst_28 = arith.constant dense<0.000000e+00> : vector<1x384xf32>
    %43 = tpu.matmul %41, %42, %cst_28 {dimension_numbers = #tpu.dot_dimension_numbers<[1], [0], [0], [1], [0, 0, 1, 1], [], []>} : vector<1x32xf32>, vector<32x384xf32>, vector<1x384xf32> -> vector<1x384xf32>
    %c0_29 = arith.constant 0 : index
    %c0_30 = arith.constant 0 : index
    %44 = vector.load %arg9[%c0_29, %c0_30] : memref<128x384xf32, #tpu.memory_space<vmem>>, vector<128x384xf32>
    %cst_31 = arith.constant dense<0.000000e+00> : vector<1x384xf32>
    %45 = tpu.matmul %10, %44, %cst_31 {dimension_numbers = #tpu.dot_dimension_numbers<[1], [0], [0], [1], [0, 0, 1, 1], [], []>} : vector<1x128xf32>, vector<128x384xf32>, vector<1x384xf32> -> vector<1x384xf32>
    %46 = vector.extract_strided_slice %43 {offsets = [0, 0], sizes = [1, 128], strides = [1, 1]} : vector<1x384xf32> to vector<1x128xf32>
    %47 = vector.extract_strided_slice %45 {offsets = [0, 0], sizes = [1, 128], strides = [1, 1]} : vector<1x384xf32> to vector<1x128xf32>
    %48 = arith.addf %46, %47 : vector<1x128xf32>
    %49 = arith.negf %48 : vector<1x128xf32>
    %50 = math.exp %49 : vector<1x128xf32>
    %cst_32 = arith.constant 1.000000e+00 : f32
    %51 = vector.broadcast %cst_32 : f32 to vector<1x128xf32>
    %52 = arith.addf %51, %50 : vector<1x128xf32>
    %53 = arith.divf %51, %52 : vector<1x128xf32>
    %54 = vector.extract_strided_slice %43 {offsets = [0, 128], sizes = [1, 128], strides = [1, 1]} : vector<1x384xf32> to vector<1x128xf32>
    %55 = vector.extract_strided_slice %45 {offsets = [0, 128], sizes = [1, 128], strides = [1, 1]} : vector<1x384xf32> to vector<1x128xf32>
    %56 = arith.addf %54, %55 : vector<1x128xf32>
    %57 = arith.negf %56 : vector<1x128xf32>
    %58 = math.exp %57 : vector<1x128xf32>
    %cst_33 = arith.constant 1.000000e+00 : f32
    %59 = vector.broadcast %cst_33 : f32 to vector<1x128xf32>
    %60 = arith.addf %59, %58 : vector<1x128xf32>
    %61 = arith.divf %59, %60 : vector<1x128xf32>
    %62 = vector.extract_strided_slice %43 {offsets = [0, 256], sizes = [1, 128], strides = [1, 1]} : vector<1x384xf32> to vector<1x128xf32>
    %63 = vector.extract_strided_slice %45 {offsets = [0, 256], sizes = [1, 128], strides = [1, 1]} : vector<1x384xf32> to vector<1x128xf32>
    %64 = arith.mulf %53, %63 : vector<1x128xf32>
    %65 = arith.addf %62, %64 : vector<1x128xf32>
    %66 = math.tanh %65 : vector<1x128xf32>
    %cst_34 = arith.constant 1.000000e+00 : f32
    %67 = vector.broadcast %cst_34 : f32 to vector<1x128xf32>
    %68 = arith.subf %67, %61 : vector<1x128xf32>
    %69 = arith.mulf %68, %66 : vector<1x128xf32>
    %70 = arith.mulf %61, %10 : vector<1x128xf32>
    %71 = arith.addf %69, %70 : vector<1x128xf32>
    %c0_35 = arith.constant 0 : index
    %c0_36 = arith.constant 0 : index
    %c0_37 = arith.constant 0 : index
    %72 = vector.load %arg10[%c0_35, %c0_36, %c0_37] : memref<1x1x128xf32, #tpu.memory_space<vmem>>, vector<1x1x128xf32>
    %73 = vector.shape_cast %72 : vector<1x1x128xf32> to vector<1x128xf32>
    %74 = vector.shape_cast %71 : vector<1x128xf32> to vector<1x1x128xf32>
    tpu.vector_store %arg10[%c0_35, %c0_36, %c0_37], %74 {strides = array<i32>} : memref<1x1x128xf32, #tpu.memory_space<vmem>>, vector<1x1x128xf32>,
    return
  }
  func.func @transform_0(%arg0: i32) -> (i32, i32, i32) {
    %c0_i32 = arith.constant 0 : i32
    %c0_i32_0 = arith.constant 0 : i32
    %c0_i32_1 = arith.constant 0 : i32
    return %arg0, %c0_i32, %c0_i32_0 : i32, i32, i32
  }
  func.func @transform_1(%arg0: i32) -> (i32, i32, i32) {
    %c0_i32 = arith.constant 0 : i32
    %c0_i32_0 = arith.constant 0 : i32
    %c0_i32_1 = arith.constant 0 : i32
    return %arg0, %c0_i32, %c0_i32_0 : i32, i32, i32
  }
  func.func @transform_2(%arg0: i32) -> (i32, i32, i32) {
    %c0_i32 = arith.constant 0 : i32
    %c0_i32_0 = arith.constant 0 : i32
    %c0_i32_1 = arith.constant 0 : i32
    return %arg0, %c0_i32, %c0_i32_0 : i32, i32, i32
  }
  func.func @transform_3(%arg0: i32) -> (i32, i32) {
    %c0_i32 = arith.constant 0 : i32
    %c0_i32_0 = arith.constant 0 : i32
    %c0_i32_1 = arith.constant 0 : i32
    return %c0_i32, %c0_i32_0 : i32, i32
  }
  func.func @transform_4(%arg0: i32) -> (i32, i32) {
    %c0_i32 = arith.constant 0 : i32
    %c0_i32_0 = arith.constant 0 : i32
    %c0_i32_1 = arith.constant 0 : i32
    return %c0_i32, %c0_i32_0 : i32, i32
  }
  func.func @transform_5(%arg0: i32) -> (i32, i32) {
    %c0_i32 = arith.constant 0 : i32
    %c0_i32_0 = arith.constant 0 : i32
    %c0_i32_1 = arith.constant 0 : i32
    return %c0_i32, %c0_i32_0 : i32, i32
  }
  func.func @transform_6(%arg0: i32) -> (i32, i32) {
    %c0_i32 = arith.constant 0 : i32
    %c0_i32_0 = arith.constant 0 : i32
    %c0_i32_1 = arith.constant 0 : i32
    return %c0_i32, %c0_i32_0 : i32, i32
  }
  func.func @transform_7(%arg0: i32) -> (i32, i32) {
    %c0_i32 = arith.constant 0 : i32
    %c0_i32_0 = arith.constant 0 : i32
    %c0_i32_1 = arith.constant 0 : i32
    return %c0_i32, %c0_i32_0 : i32, i32
  }
  func.func @transform_8(%arg0: i32) -> (i32, i32) {
    %c0_i32 = arith.constant 0 : i32
    %c0_i32_0 = arith.constant 0 : i32
    %c0_i32_1 = arith.constant 0 : i32
    return %c0_i32, %c0_i32_0 : i32, i32
  }
  func.func @transform_9(%arg0: i32) -> (i32, i32, i32) {
    %c0_i32 = arith.constant 0 : i32
    %c0_i32_0 = arith.constant 0 : i32
    %c0_i32_1 = arith.constant 0 : i32
    return %arg0, %c0_i32, %c0_i32_0 : i32, i32, i32
  }
}

</mosaic_0001>

<llo_original>
// kernel: forward.1
$region0: #{forward.1}
  #allocation0 [shape = 'u32[]', space=smem, size = 0x4, offset = 0x4, fixed_abs, tag = 'smem constant byte address 0x4 - core index']
  #allocation1 [shape = 'u32[144,128]{1,0:T(1,128)}', space=vmem, size = 0x12000, scoped, tag = 'internal scratch']
  %s0 = inlined_call_operand.vmem [shape: f32[2,1,64], index: 0, kind: input, shape index: {}]
  %s1 = inlined_call_operand.vmem [shape: f32[2,8,32], index: 1, kind: input, shape index: {}]
  %s2 = inlined_call_operand.vmem [shape: f32[2,8,1], index: 2, kind: input, shape index: {}]
  %s3 = inlined_call_operand.hbm [shape: f32[64,32], index: 3, kind: input, shape index: {}]
  %s4 = inlined_call_operand.hbm [shape: f32[32,128], index: 4, kind: input, shape index: {}]
  %s5 = inlined_call_operand.hbm [shape: f32[32,32], index: 5, kind: input, shape index: {}]
  %s6 = inlined_call_operand.vmem [shape: f32[32,1], index: 6, kind: input, shape index: {}]
  %s7 = inlined_call_operand.hbm [shape: f32[32,384], index: 7, kind: input, shape index: {}]
  %s8 = inlined_call_operand.hbm [shape: f32[128,384], index: 8, kind: input, shape index: {}]
  %s9 = inlined_call_operand.hbm [shape: f32[2,1,128], index: 9, kind: output, shape index: {}]
  %s10 = sld [smem:[#allocation0]]
  $region89: #{forward.1} parent=0
    _
  %s12 = ssub.s32 1, %s10
  %s13 = scalar_select 0, %s12, %s10
  $region1: #{forward.1} parent=0
    #allocation2 [shape = 'u8[32768]{0}', space=vmem, size = 0x8000, scoped, tag = 'input window, operand 3, single buffered']
    #allocation3 [shape = 's32[2]{0}', space=sflag, size = 0x8, scoped, tag = 'scoped memory for forward.1']
    #allocation4 [shape = 's32[2]{0}', space=sflag, size = 0x8, scoped, tag = 'scoped memory for forward.1']
    #allocation5 [shape = 'u8[16384]{0}', space=vmem, size = 0x4000, scoped, tag = 'input window, operand 4, single buffered']
    #allocation6 [shape = 's32[1]{0}', space=sflag, size = 0x4, scoped, tag = 'scoped memory for forward.1']
    #allocation7 [shape = 'u8[16384]{0}', space=vmem, size = 0x4000, scoped, tag = 'input window, operand 5, single buffered']
    #allocation8 [shape = 'u8[49152]{0}', space=vmem, size = 0xc000, scoped, tag = 'input window, operand 7, single buffered']
    #allocation9 [shape = 's32[1]{0}', space=sflag, size = 0x4, scoped, tag = 'scoped memory for forward.1']
    #allocation10 [shape = 'u8[196608]{0}', space=vmem, size = 0x30000, scoped, tag = 'input window, operand 8, single buffered']
    #allocation11 [shape = 'u8[1024]{0}', space=vmem, size = 0x400, scoped, tag = 'output window, operand 0']
    %14 = vsyncpa [#allocation3], 0
    %15 = vsyncpa [#allocation6], 0
    %16 = vsyncpa [#allocation9], 0
    %17 = vsyncpa [#allocation4], 0
    %s18 = scalar_lea.sflag [#allocation4], 1
    %19 = vsyncpa %s18, 0
    loop: start=0, step=1, limit=4
    $region2: #{forward.1} parent=1 // loop_pre_header
      _
    $region3: #{forward.1} parent=1 // loop_header
      %s21 = sphi 0, %s25
      %p22 = scmp.ge.s32.totalorder %s21, 4
      %s31 = sphi 0, %s33
      %s34 = sphi 0, %s31
      %s35 = sphi 0, %s34
      %s51 = sphi 0, %s35
      %s57 = sphi 0, %s59
      %s60 = sphi 0, %s57
      %s61 = sphi 0, %s60
      %s77 = sphi 0, %s61
      %s83 = sphi 0, %s85
      %s86 = sphi 0, %s83
      %s87 = sphi 0, %s86
      %s103 = sphi 0, %s87
      %s107 = sphi 0, %s107
      %s109 = sphi 0, %s107
      %s110 = sphi 0, %s109
      %s124 = sphi 0, %s110
      %s128 = sphi 0, %s128
      %s130 = sphi 0, %s128
      %s131 = sphi 0, %s130
      %s145 = sphi 0, %s131
      %s149 = sphi 0, %s149
      %s151 = sphi 0, %s149
      %s152 = sphi 0, %s151
      %s166 = sphi 0, %s152
      %s170 = sphi 0, %s170
      %s172 = sphi 0, %s170
      %s173 = sphi 0, %s172
      %s187 = sphi 0, %s173
      %s191 = sphi 0, %s191
      %s193 = sphi 0, %s191
      %s194 = sphi 0, %s193
      %s208 = sphi 0, %s194
      %s212 = sphi 0, %s212
      %s214 = sphi 0, %s212
      %s215 = sphi 0, %s214
      %s229 = sphi 0, %s215
      %s235 = sphi 0, %s237
      %s238 = sphi 0, %s235
      %s239 = sphi 0, %s238
      %s255 = sphi 0, %s239
    $region4: #{forward.1} parent=1 // loop_header_branch
      %24 = sbr.rel (%p22) target = $region8
    $region5: #{forward.1} parent=1 // loop_body
      %s26 = ssub.s32 %s21, 1
      %s27 = ssub.s32 %s21, 2
      %s28 = sadd.s32 %s21, 1
      %s29 = ssub.s32 %s21, %s28
      %p30 = scmp.eq.s32.totalorder %s29, 0
      %s32 = sadd.s32 %s31, 1
      %s33 = scalar_select %p30, %s31, %s32
      %p36 = pneg %p30
      %p37 = scmp.eq.s32.totalorder %s21, 1
      %p38 = por %p36, %p37
      %p39 = scmp.ne.s32.totalorder %s31, %s34
      %p40 = scmp.eq.s32.totalorder %s21, 0
      %p41 = por %p39, %p40
      %p42 = scmp.ne.s32.totalorder %s31, %s34
      %p43 = scmp.eq.s32.totalorder %s26, 1
      %p44 = por %p42, %p43
      %p45 = scmp.ne.s32.totalorder %s34, %s35
      %p46 = scmp.eq.s32.totalorder %s26, 0
      %p47 = por %p45, %p46
      %p48 = scmp.ne.s32.totalorder %s34, %s35
      %p49 = scmp.eq.s32.totalorder %s27, 1
      %p50 = por %p48, %p49
      %p52 = scmp.ne.s32.totalorder %s35, %s51
      %p53 = scmp.eq.s32.totalorder %s27, 0
      %p54 = por %p52, %p53
      %s55 = ssub.s32 %s21, %s28
      %p56 = scmp.eq.s32.totalorder %s55, 0
      %s58 = sadd.s32 %s57, 1
      %s59 = scalar_select %p56, %s57, %s58
      %p62 = pneg %p56
      %p63 = scmp.eq.s32.totalorder %s21, 1
      %p64 = por %p62, %p63
      %p65 = scmp.ne.s32.totalorder %s57, %s60
      %p66 = scmp.eq.s32.totalorder %s21, 0
      %p67 = por %p65, %p66
      %p68 = scmp.ne.s32.totalorder %s57, %s60
      %p69 = scmp.eq.s32.totalorder %s26, 1
      %p70 = por %p68, %p69
      %p71 = scmp.ne.s32.totalorder %s60, %s61
      %p72 = scmp.eq.s32.totalorder %s26, 0
      %p73 = por %p71, %p72
      %p74 = scmp.ne.s32.totalorder %s60, %s61
      %p75 = scmp.eq.s32.totalorder %s27, 1
      %p76 = por %p74, %p75
      %p78 = scmp.ne.s32.totalorder %s61, %s77
      %p79 = scmp.eq.s32.totalorder %s27, 0
      %p80 = por %p78, %p79
      %s81 = ssub.s32 %s21, %s28
      %p82 = scmp.eq.s32.totalorder %s81, 0
      %s84 = sadd.s32 %s83, 1
      %s85 = scalar_select %p82, %s83, %s84
      %p88 = pneg %p82
      %p89 = scmp.eq.s32.totalorder %s21, 1
      %p90 = por %p88, %p89
      %p91 = scmp.ne.s32.totalorder %s83, %s86
      %p92 = scmp.eq.s32.totalorder %s21, 0
      %p93 = por %p91, %p92
      %p94 = scmp.ne.s32.totalorder %s83, %s86
      %p95 = scmp.eq.s32.totalorder %s26, 1
      %p96 = por %p94, %p95
      %p97 = scmp.ne.s32.totalorder %s86, %s87
      %p98 = scmp.eq.s32.totalorder %s26, 0
      %p99 = por %p97, %p98
      %p100 = scmp.ne.s32.totalorder %s86, %s87
      %p101 = scmp.eq.s32.totalorder %s27, 1
      %p102 = por %p100, %p101
      %p104 = scmp.ne.s32.totalorder %s87, %s103
      %p105 = scmp.eq.s32.totalorder %s27, 0
      %p106 = por %p104, %p105
      %s108 = sadd.s32 %s107, 1
      %p111 = scmp.eq.s32.totalorder %s21, 1
      %p112 = scmp.ne.s32.totalorder %s107, %s109
      %p113 = scmp.eq.s32.totalorder %s21, 0
      %p114 = por %p112, %p113
      %p115 = scmp.ne.s32.totalorder %s107, %s109
      %p116 = scmp.eq.s32.totalorder %s26, 1
      %p117 = por %p115, %p116
      %p118 = scmp.ne.s32.totalorder %s109, %s110
      %p119 = scmp.eq.s32.totalorder %s26, 0
      %p120 = por %p118, %p119
      %p121 = scmp.ne.s32.totalorder %s109, %s110
      %p122 = scmp.eq.s32.totalorder %s27, 1
      %p123 = por %p121, %p122
      %p125 = scmp.ne.s32.totalorder %s110, %s124
      %p126 = scmp.eq.s32.totalorder %s27, 0
      %p127 = por %p125, %p126
      %s129 = sadd.s32 %s128, 1
      %p132 = scmp.eq.s32.totalorder %s21, 1
      %p133 = scmp.ne.s32.totalorder %s128, %s130
      %p134 = scmp.eq.s32.totalorder %s21, 0
      %p135 = por %p133, %p134
      %p136 = scmp.ne.s32.totalorder %s128, %s130
      %p137 = scmp.eq.s32.totalorder %s26, 1
      %p138 = por %p136, %p137
      %p139 = scmp.ne.s32.totalorder %s130, %s131
      %p140 = scmp.eq.s32.totalorder %s26, 0
      %p141 = por %p139, %p140
      %p142 = scmp.ne.s32.totalorder %s130, %s131
      %p143 = scmp.eq.s32.totalorder %s27, 1
      %p144 = por %p142, %p143
      %p146 = scmp.ne.s32.totalorder %s131, %s145
      %p147 = scmp.eq.s32.totalorder %s27, 0
      %p148 = por %p146, %p147
      %s150 = sadd.s32 %s149, 1
      %p153 = scmp.eq.s32.totalorder %s21, 1
      %p154 = scmp.ne.s32.totalorder %s149, %s151
      %p155 = scmp.eq.s32.totalorder %s21, 0
      %p156 = por %p154, %p155
      %p157 = scmp.ne.s32.totalorder %s149, %s151
      %p158 = scmp.eq.s32.totalorder %s26, 1
      %p159 = por %p157, %p158
      %p160 = scmp.ne.s32.totalorder %s151, %s152
      %p161 = scmp.eq.s32.totalorder %s26, 0
      %p162 = por %p160, %p161
      %p163 = scmp.ne.s32.totalorder %s151, %s152
      %p164 = scmp.eq.s32.totalorder %s27, 1
      %p165 = por %p163, %p164
      %p167 = scmp.ne.s32.totalorder %s152, %s166
      %p168 = scmp.eq.s32.totalorder %s27, 0
      %p169 = por %p167, %p168
      %s171 = sadd.s32 %s170, 1
      %p174 = scmp.eq.s32.totalorder %s21, 1
      %p175 = scmp.ne.s32.totalorder %s170, %s172
      %p176 = scmp.eq.s32.totalorder %s21, 0
      %p177 = por %p175, %p176
      %p178 = scmp.ne.s32.totalorder %s170, %s172
      %p179 = scmp.eq.s32.totalorder %s26, 1
      %p180 = por %p178, %p179
      %p181 = scmp.ne.s32.totalorder %s172, %s173
      %p182 = scmp.eq.s32.totalorder %s26, 0
      %p183 = por %p181, %p182
      %p184 = scmp.ne.s32.totalorder %s172, %s173
      %p185 = scmp.eq.s32.totalorder %s27, 1
      %p186 = por %p184, %p185
      %p188 = scmp.ne.s32.totalorder %s173, %s187
      %p189 = scmp.eq.s32.totalorder %s27, 0
      %p190 = por %p188, %p189
      %s192 = sadd.s32 %s191, 1
      %p195 = scmp.eq.s32.totalorder %s21, 1
      %p196 = scmp.ne.s32.totalorder %s191, %s193
      %p197 = scmp.eq.s32.totalorder %s21, 0
      %p198 = por %p196, %p197
      %p199 = scmp.ne.s32.totalorder %s191, %s193
      %p200 = scmp.eq.s32.totalorder %s26, 1
      %p201 = por %p199, %p200
      %p202 = scmp.ne.s32.totalorder %s193, %s194
      %p203 = scmp.eq.s32.totalorder %s26, 0
      %p204 = por %p202, %p203
      %p205 = scmp.ne.s32.totalorder %s193, %s194
      %p206 = scmp.eq.s32.totalorder %s27, 1
      %p207 = por %p205, %p206
      %p209 = scmp.ne.s32.totalorder %s194, %s208
      %p210 = scmp.eq.s32.totalorder %s27, 0
      %p211 = por %p209, %p210
      %s213 = sadd.s32 %s212, 1
      %p216 = scmp.eq.s32.totalorder %s21, 1
      %p217 = scmp.ne.s32.totalorder %s212, %s214
      %p218 = scmp.eq.s32.totalorder %s21, 0
      %p219 = por %p217, %p218
      %p220 = scmp.ne.s32.totalorder %s212, %s214
      %p221 = scmp.eq.s32.totalorder %s26, 1
      %p222 = por %p220, %p221
      %p223 = scmp.ne.s32.totalorder %s214, %s215
      %p224 = scmp.eq.s32.totalorder %s26, 0
      %p225 = por %p223, %p224
      %p226 = scmp.ne.s32.totalorder %s214, %s215
      %p227 = scmp.eq.s32.totalorder %s27, 1
      %p228 = por %p226, %p227
      %p230 = scmp.ne.s32.totalorder %s215, %s229
      %p231 = scmp.eq.s32.totalorder %s27, 0
      %p232 = por %p230, %p231
      %s233 = ssub.s32 %s21, %s28
      %p234 = scmp.eq.s32.totalorder %s233, 0
      %s236 = sadd.s32 %s235, 1
      %s237 = scalar_select %p234, %s235, %s236
      %p240 = pneg %p234
      %p241 = scmp.eq.s32.totalorder %s21, 1
      %p242 = por %p240, %p241
      %p243 = scmp.ne.s32.totalorder %s235, %s238
      %p244 = scmp.eq.s32.totalorder %s21, 0
      %p245 = por %p243, %p244
      %p246 = scmp.ne.s32.totalorder %s235, %s238
      %p247 = scmp.eq.s32.totalorder %s26, 1
      %p248 = por %p246, %p247
      %p249 = scmp.ne.s32.totalorder %s238, %s239
      %p250 = scmp.eq.s32.totalorder %s26, 0
      %p251 = por %p249, %p250
      %p252 = scmp.ne.s32.totalorder %s238, %s239
      %p253 = scmp.eq.s32.totalorder %s27, 1
      %p254 = por %p252, %p253
      %p256 = scmp.ne.s32.totalorder %s239, %s255
      %p257 = scmp.eq.s32.totalorder %s27, 0
      %p258 = por %p256, %p257
      %p259 = scmp.le.s32.totalorder 1, %s21
      %p260 = scmp.lt.s32.totalorder %s21, 3
      %p261 = pnand %p259, %p260
      %p262 = pneg %p261
      // Predicated region
      $region9: #{forward.1} parent=5 // pred_check
        _
      $region10: #{forward.1} parent=5 // pred_check_branch
        %264 = sbr.rel (%p261) target = $region12
      $region11: #{forward.1} parent=5 // pred_region
        %s265 = ssub.s32 %s21, 1
        // Predicated region
        $region13: #{forward.1} parent=11 // pred_check
          %p266 = pneg %p120
        $region14: #{forward.1} parent=11 // pred_check_branch
          %268 = sbr.rel (%p266) target = $region16
        $region15: #{forward.1} parent=11 // pred_region
          %s270 = ssub.s32 1024, 1024
          %271 = vsyncadd [#allocation3], %s270
          %s272 = sshll.u32 [#allocation2], 4
          %s273 = int_to_ptr.vmem [resolvable:$true] %s272
          %278 = dma.hbm_to_vmem [thread:$0]  %s3, 1024, %s273, [#allocation3], 128, 128, 8
        $region16: #{forward.1} parent=11 // pred_fallthru
          _
        // Predicated region
        $region17: #{forward.1} parent=11 // pred_check
          %p279 = pneg %p141
        $region18: #{forward.1} parent=11 // pred_check_branch
          %281 = sbr.rel (%p279) target = $region20
        $region19: #{forward.1} parent=11 // pred_region
          %s283 = ssub.s32 512, 512
          %284 = vsyncadd [#allocation6], %s283
          %s285 = sshll.u32 [#allocation5], 4
          %s286 = int_to_ptr.vmem [resolvable:$true] %s285
          %291 = dma.hbm_to_vmem [thread:$0]  %s4, 512, %s286, [#allocation6], 128, 128, 8
        $region20: #{forward.1} parent=11 // pred_fallthru
          _
        // Predicated region
        $region21: #{forward.1} parent=11 // pred_check
          %p292 = pneg %p162
        $region22: #{forward.1} parent=11 // pred_check_branch
          %294 = sbr.rel (%p292) target = $region24
        $region23: #{forward.1} parent=11 // pred_region
          %s296 = ssub.s32 512, 512
          %297 = vsyncadd [#allocation6], %s296
          %s298 = sshll.u32 [#allocation7], 4
          %s299 = int_to_ptr.vmem [resolvable:$true] %s298
          %304 = dma.hbm_to_vmem [thread:$0]  %s5, 512, %s299, [#allocation6], 128, 128, 8
        $region24: #{forward.1} parent=11 // pred_fallthru
          _
        // Predicated region
        $region25: #{forward.1} parent=11 // pred_check
          %p305 = pneg %p183
        $region26: #{forward.1} parent=11 // pred_check_branch
          %307 = sbr.rel (%p305) target = $region28
        $region27: #{forward.1} parent=11 // pred_region
          _
        $region28: #{forward.1} parent=11 // pred_fallthru
          _
        // Predicated region
        $region29: #{forward.1} parent=11 // pred_check
          %p308 = pneg %p204
        $region30: #{forward.1} parent=11 // pred_check_branch
          %310 = sbr.rel (%p308) target = $region32
        $region31: #{forward.1} parent=11 // pred_region
          %s312 = ssub.s32 1536, 1536
          %313 = vsyncadd [#allocation9], %s312
          %s314 = sshll.u32 [#allocation8], 4
          %s315 = int_to_ptr.vmem [resolvable:$true] %s314
          %320 = dma.hbm_to_vmem [thread:$0]  %s7, 1536, %s315, [#allocation9], 384, 384, 24
        $region32: #{forward.1} parent=11 // pred_fallthru
          _
        // Predicated region
        $region33: #{forward.1} parent=11 // pred_check
          %p321 = pneg %p225
        $region34: #{forward.1} parent=11 // pred_check_branch
          %323 = sbr.rel (%p321) target = $region36
        $region35: #{forward.1} parent=11 // pred_region
          %s325 = ssub.s32 6144, 6144
          %326 = vsyncadd [#allocation9], %s325
          %s327 = sshll.u32 [#allocation10], 4
          %s328 = int_to_ptr.vmem [resolvable:$true] %s327
          %333 = dma.hbm_to_vmem [thread:$0]  %s8, 6144, %s328, [#allocation9], 384, 384, 24
        $region36: #{forward.1} parent=11 // pred_fallthru
          _
      $region12: #{forward.1} parent=5 // pred_fallthru
        _
      %p334 = scmp.lt.s32.totalorder %s21, 2
      // Predicated region
      $region37: #{forward.1} parent=5 // pred_check
        %p335 = pneg %p334
      $region38: #{forward.1} parent=5 // pred_check_branch
        %337 = sbr.rel (%p335) target = $region40
      $region39: #{forward.1} parent=5 // pred_region
        // Predicated region
        $region41: #{forward.1} parent=39 // pred_check
          %p338 = pneg %p41
        $region42: #{forward.1} parent=39 // pred_check_branch
          %340 = sbr.rel (%p338) target = $region44
        $region43: #{forward.1} parent=39 // pred_region
          %p341 = scmp.lt.s32.totalorder %s21, 1
          %s342 = scalar_select %p341, %s21, 1
          %s343 = scalar_lea.vmem %s0, %s342
        $region44: #{forward.1} parent=39 // pred_fallthru
          _
        // Predicated region
        $region45: #{forward.1} parent=39 // pred_check
          %p344 = pneg %p67
        $region46: #{forward.1} parent=39 // pred_check_branch
          %346 = sbr.rel (%p344) target = $region48
        $region47: #{forward.1} parent=39 // pred_region
          %p347 = scmp.lt.s32.totalorder %s21, 1
          %s348 = scalar_select %p347, %s21, 1
          %s349 = smul.addr %s348, 8
          %s350 = scalar_lea.vmem %s1, %s349
        $region48: #{forward.1} parent=39 // pred_fallthru
          _
        // Predicated region
        $region49: #{forward.1} parent=39 // pred_check
          %p351 = pneg %p93
        $region50: #{forward.1} parent=39 // pred_check_branch
          %353 = sbr.rel (%p351) target = $region52
        $region51: #{forward.1} parent=39 // pred_region
          %p354 = scmp.lt.s32.totalorder %s21, 1
          %s355 = scalar_select %p354, %s21, 1
          %s356 = smul.addr %s355, 8
          %s357 = scalar_lea.vmem %s2, %s356
        $region52: #{forward.1} parent=39 // pred_fallthru
          _
      $region40: #{forward.1} parent=5 // pred_fallthru
        _
      %p358 = scmp.le.s32.totalorder 1, %s21
      %p359 = scmp.lt.s32.totalorder %s21, 3
      %p360 = pnand %p358, %p359
      %p361 = pneg %p360
      // Predicated region
      $region53: #{forward.1} parent=5 // pred_check
        _
      $region54: #{forward.1} parent=5 // pred_check_branch
        %363 = sbr.rel (%p360) target = $region56
      $region55: #{forward.1} parent=5 // pred_region
        %s364 = ssub.s32 %s21, 1
        // Predicated region
        $region57: #{forward.1} parent=55 // pred_check
          %p365 = pneg %p120
        $region58: #{forward.1} parent=55 // pred_check_branch
          %367 = sbr.rel (%p365) target = $region60
        $region59: #{forward.1} parent=55 // pred_region
          %368 = dma.done [#allocation3], 1024
        $region60: #{forward.1} parent=55 // pred_fallthru
          _
        // Predicated region
        $region61: #{forward.1} parent=55 // pred_check
          %p369 = pneg %p141
        $region62: #{forward.1} parent=55 // pred_check_branch
          %371 = sbr.rel (%p369) target = $region64
        $region63: #{forward.1} parent=55 // pred_region
          %372 = dma.done [#allocation6], 512
        $region64: #{forward.1} parent=55 // pred_fallthru
          _
        // Predicated region
        $region65: #{forward.1} parent=55 // pred_check
          %p373 = pneg %p162
        $region66: #{forward.1} parent=55 // pred_check_branch
          %375 = sbr.rel (%p373) target = $region68
        $region67: #{forward.1} parent=55 // pred_region
          %376 = dma.done [#allocation6], 512
        $region68: #{forward.1} parent=55 // pred_fallthru
          _
        // Predicated region
        $region69: #{forward.1} parent=55 // pred_check
          %p377 = pneg %p204
        $region70: #{forward.1} parent=55 // pred_check_branch
          %379 = sbr.rel (%p377) target = $region72
        $region71: #{forward.1} parent=55 // pred_region
          %380 = dma.done [#allocation9], 1536
        $region72: #{forward.1} parent=55 // pred_fallthru
          _
        // Predicated region
        $region73: #{forward.1} parent=55 // pred_check
          %p381 = pneg %p225
        $region74: #{forward.1} parent=55 // pred_check_branch
          %383 = sbr.rel (%p381) target = $region76
        $region75: #{forward.1} parent=55 // pred_region
          %384 = dma.done [#allocation9], 6144
        $region76: #{forward.1} parent=55 // pred_fallthru
          _
        %p385 = scmp.lt.s32.totalorder %s26, 1
        %s386 = scalar_select %p385, %s26, 1
        %s387 = scalar_lea.vmem %s0, %s386
        %p388 = pneg %p47
        %p389 = pneg %p44
        %p390 = scmp.lt.s32.totalorder %s26, 1
        %s391 = scalar_select %p390, %s26, 1
        %s392 = smul.addr %s391, 8
        %s393 = scalar_lea.vmem %s1, %s392
        %p394 = pneg %p73
        %p395 = pneg %p70
        %p396 = scmp.lt.s32.totalorder %s26, 1
        %s397 = scalar_select %p396, %s26, 1
        %s398 = smul.addr %s397, 8
        %s399 = scalar_lea.vmem %s2, %s398
        %p400 = pneg %p99
        %p401 = pneg %p96
        %p402 = pneg %p120
        %p403 = pneg %p117
        %p404 = pneg %p141
        %p405 = pneg %p138
        %p406 = pneg %p162
        %p407 = pneg %p159
        %p408 = pneg %p183
        %p409 = pneg %p180
        %p410 = pneg %p204
        %p411 = pneg %p201
        %p412 = pneg %p225
        %p413 = pneg %p222
        %p414 = pneg %p251
        %p415 = pneg %p248
        %s416 = sand.u32 %s238, 1
        %s417 = scalar_lea.sflag [#allocation4], %s416
        %s418 = sand.u32 %s238, 1
        %s419 = scalar_lea.vmem [#allocation11], %s418
        %p420 = scmp.lt.s32.totalorder %s26, 1
        %s421 = scalar_select %p420, %s26, 1
        %s422 = scalar_lea.vmem %s0, %s421
        %p423 = scmp.lt.s32.totalorder %s26, 1
        %s424 = scalar_select %p423, %s26, 1
        %s425 = smul.addr %s424, 8
        %s426 = scalar_lea.vmem %s1, %s425
        %p427 = scmp.lt.s32.totalorder %s26, 1
        %s428 = scalar_select %p427, %s26, 1
        %s429 = smul.addr %s428, 8
        %s430 = scalar_lea.vmem %s2, %s429
        %v431 = vld [vmem:[%s422] sm:$0x1]
        %v432 = vld [vmem:[%s426] sm:$0xff]
        %v433 = vld [vmem:[%s430] sm:$0xff]
        %v434 = vld [vmem:[#allocation2] sm:$0xff]
        %v435 = vld [vmem:[#allocation2 + $0x8] sm:$0xff]
        %v436 = vld [vmem:[#allocation2 + $0x10] sm:$0xff]
        %v437 = vld [vmem:[#allocation2 + $0x18] sm:$0xff]
        %v438 = vld [vmem:[#allocation2 + $0x20] sm:$0xff]
        %v439 = vld [vmem:[#allocation2 + $0x28] sm:$0xff]
        %v440 = vld [vmem:[#allocation2 + $0x30] sm:$0xff]
        %v441 = vld [vmem:[#allocation2 + $0x38] sm:$0xff]
        %vm442 = vcmask 523264
        %v444 = vsel %vm442, %v431, 0
        %446 = vmatprep.subr.mxu0 0.0
        %447 = vmatpush1.msra.mxu0 %v434
        %448 = vmatprep.subr.mxu0 0.0
        %449 = vmatpush1.msra.mxu0 %v435
        %450 = vmatprep.subr.mxu0 0.0
        %451 = vmatpush1.msra.mxu0 %v436
        %452 = vmatprep.subr.mxu0 0.0
        %453 = vmatpush1.msra.mxu0 %v437
        %454 = vmatprep.subr.mxu0 0.0
        %455 = vmatpush1.msra.mxu0 %v438
        %456 = vmatprep.subr.mxu0 0.0
        %457 = vmatpush1.msra.mxu0 %v439
        %458 = vmatprep.subr.mxu0 0.0
        %459 = vmatpush1.msra.mxu0 %v440
        %460 = vmatprep.subr.mxu0 0.0
        %461 = vmatpush1.msra.mxu0 %v441
        %462 = vmatprep.subr.mxu0 0.0
        %463 = vmatpush1.msra.mxu0 0.0
        %464 = vmatprep.subr.mxu0 0.0
        %465 = vmatpush1.msra.mxu0 0.0
        %466 = vmatprep.subr.mxu0 0.0
        %467 = vmatpush1.msra.mxu0 0.0
        %468 = vmatprep.subr.mxu0 0.0
        %469 = vmatpush1.msra.mxu0 0.0
        %470 = vmatprep.subr.mxu0 0.0
        %471 = vmatpush1.msra.mxu0 0.0
        %472 = vmatprep.subr.mxu0 0.0
        %473 = vmatpush1.msra.mxu0 0.0
        %474 = vmatprep.subr.mxu0 0.0
        %475 = vmatpush1.msra.mxu0 0.0
        %476 = vmatprep.subr.mxu0 0.0
        %477 = vmatpush1.msra.mxu0 0.0
        %478 = vmatprep.subr.mxu0 0.0
        %479 = vmatpush1.msra.mxu0 0.0
        %480 = vmatprep.subr.mxu0 0.0
        %481 = vmatpush1.msra.mxu0 0.0
        %482 = vmatprep.subr.mxu0 0.0
        %483 = vmatpush1.msra.mxu0 0.0
        %484 = vmatprep.subr.mxu0 0.0
        %485 = vmatpush1.msra.mxu0 0.0
        %486 = vmatprep.subr.mxu0 0.0
        %487 = vmatpush1.msra.mxu0 0.0
        %488 = vmatprep.subr.mxu0 0.0
        %489 = vmatpush1.msra.mxu0 0.0
        %490 = vmatprep.subr.mxu0 0.0
        %491 = vmatpush1.msra.mxu0 0.0
        %492 = vmatprep.subr.mxu0 0.0
        %493 = vmatpush1.msra.mxu0 0.0
        %494 = vmatprep.subr.mxu0 0.0
        %495 = vmatpush1.msra.mxu0 0.0
        %496 = vmatprep.subr.mxu0 0.0
        %497 = vmatpush1.msra.mxu0 0.0
        %498 = vmatprep.subr.mxu0 0.0
        %499 = vmatpush1.msra.mxu0 0.0
        %500 = vmatprep.subr.mxu0 0.0
        %501 = vmatpush1.msra.mxu0 0.0
        %502 = vmatprep.subr.mxu0 0.0
        %503 = vmatpush1.msra.mxu0 0.0
        %504 = vmatprep.subr.mxu0 0.0
        %505 = vmatpush1.msra.mxu0 0.0
        %506 = vmatprep.subr.mxu0 0.0
        %507 = vmatpush1.msra.mxu0 0.0
        %508 = vmatprep.subr.mxu0 0.0
        %509 = vmatpush1.msra.mxu0 0.0
        %510 = vmatprep.mubr.f32.mxu0 0.0
        %511 = vmatmul.mubr.f32.gmra.mrb[0].mxu0 %v444
        %v512 = vpop.f32.mrb[0].mxu0
        %v513 = vadd.f32 0.0, %v512
        %v514 = vpop.f32.mrb[0].mxu0
        %515 = vdwg.mxu0
        %v516 = vld [vmem:[#allocation5] sm:$0xff]
        %v517 = vld [vmem:[#allocation5 + $0x8] sm:$0xff]
        %v518 = vld [vmem:[#allocation5 + $0x10] sm:$0xff]
        %v519 = vld [vmem:[#allocation5 + $0x18] sm:$0xff]
        %vm520 = vcmask 261120
        %v521 = vsel %vm520, %v431, 0
        %523 = vmatprep.subr.mxu0 0.0
        %524 = vmatpush1.msra.mxu0 %v516
        %525 = vmatprep.subr.mxu0 0.0
        %526 = vmatpush1.msra.mxu0 %v517
        %527 = vmatprep.subr.mxu0 0.0
        %528 = vmatpush1.msra.mxu0 %v518
        %529 = vmatprep.subr.mxu0 0.0
        %530 = vmatpush1.msra.mxu0 %v519
        %531 = vmatprep.subr.mxu0 0.0
        %532 = vmatpush1.msra.mxu0 0.0
        %533 = vmatprep.subr.mxu0 0.0
        %534 = vmatpush1.msra.mxu0 0.0
        %535 = vmatprep.subr.mxu0 0.0
        %536 = vmatpush1.msra.mxu0 0.0
        %537 = vmatprep.subr.mxu0 0.0
        %538 = vmatpush1.msra.mxu0 0.0
        %539 = vmatprep.subr.mxu0 0.0
        %540 = vmatpush1.msra.mxu0 0.0
        %541 = vmatprep.subr.mxu0 0.0
        %542 = vmatpush1.msra.mxu0 0.0
        %543 = vmatprep.subr.mxu0 0.0
        %544 = vmatpush1.msra.mxu0 0.0
        %545 = vmatprep.subr.mxu0 0.0
        %546 = vmatpush1.msra.mxu0 0.0
        %547 = vmatprep.subr.mxu0 0.0
        %548 = vmatpush1.msra.mxu0 0.0
        %549 = vmatprep.subr.mxu0 0.0
        %550 = vmatpush1.msra.mxu0 0.0
        %551 = vmatprep.subr.mxu0 0.0
        %552 = vmatpush1.msra.mxu0 0.0
        %553 = vmatprep.subr.mxu0 0.0
        %554 = vmatpush1.msra.mxu0 0.0
        %555 = vmatprep.subr.mxu0 0.0
        %556 = vmatpush1.msra.mxu0 0.0
        %557 = vmatprep.subr.mxu0 0.0
        %558 = vmatpush1.msra.mxu0 0.0
        %559 = vmatprep.subr.mxu0 0.0
        %560 = vmatpush1.msra.mxu0 0.0
        %561 = vmatprep.subr.mxu0 0.0
        %562 = vmatpush1.msra.mxu0 0.0
        %563 = vmatprep.subr.mxu0 0.0
        %564 = vmatpush1.msra.mxu0 0.0
        %565 = vmatprep.subr.mxu0 0.0
        %566 = vmatpush1.msra.mxu0 0.0
        %567 = vmatprep.subr.mxu0 0.0
        %568 = vmatpush1.msra.mxu0 0.0
        %569 = vmatprep.subr.mxu0 0.0
        %570 = vmatpush1.msra.mxu0 0.0
        %571 = vmatprep.subr.mxu0 0.0
        %572 = vmatpush1.msra.mxu0 0.0
        %573 = vmatprep.subr.mxu0 0.0
        %574 = vmatpush1.msra.mxu0 0.0
        %575 = vmatprep.subr.mxu0 0.0
        %576 = vmatpush1.msra.mxu0 0.0
        %577 = vmatprep.subr.mxu0 0.0
        %578 = vmatpush1.msra.mxu0 0.0
        %579 = vmatprep.subr.mxu0 0.0
        %580 = vmatpush1.msra.mxu0 0.0
        %581 = vmatprep.subr.mxu0 0.0
        %582 = vmatpush1.msra.mxu0 0.0
        %583 = vmatprep.subr.mxu0 0.0
        %584 = vmatpush1.msra.mxu0 0.0
        %585 = vmatprep.subr.mxu0 0.0
        %586 = vmatpush1.msra.mxu0 0.0
        %587 = vmatprep.mubr.f32.mxu0 0.0
        %588 = vmatmul.mubr.f32.gmra.mrb[0].mxu0 %v521
        %v589 = vpop.f32.mrb[0].mxu0
        %v590 = vadd.f32 0.0, %v589
        %v591 = vpop.f32.mrb[0].mxu0
        %592 = vdwg.mxu0
        %v593 = vld [vmem:[#allocation7] sm:$0xff]
        %v594 = vld [vmem:[#allocation7 + $0x8] sm:$0xff]
        %v595 = vld [vmem:[#allocation7 + $0x10] sm:$0xff]
        %v596 = vld [vmem:[#allocation7 + $0x18] sm:$0xff]
        %v597 = vlaneseq
        %v598 = vshrl.u32 %v597, 7
        %v599 = vsub.s32 0, %v598
        %v600 = vrot.slane %v513, %v599
        %v602 = vsel %vm520, %v432, 0
        %604 = vmatprep.subr.mxu0 0.0
        %605 = vmatpush1.msra.mxu0 %v593
        %606 = vmatprep.subr.mxu0 0.0
        %607 = vmatpush1.msra.mxu0 %v594
        %608 = vmatprep.subr.mxu0 0.0
        %609 = vmatpush1.msra.mxu0 %v595
        %610 = vmatprep.subr.mxu0 0.0
        %611 = vmatpush1.msra.mxu0 %v596
        %612 = vmatprep.subr.mxu0 0.0
        %613 = vmatpush1.msra.mxu0 0.0
        %614 = vmatprep.subr.mxu0 0.0
        %615 = vmatpush1.msra.mxu0 0.0
        %616 = vmatprep.subr.mxu0 0.0
        %617 = vmatpush1.msra.mxu0 0.0
        %618 = vmatprep.subr.mxu0 0.0
        %619 = vmatpush1.msra.mxu0 0.0
        %620 = vmatprep.subr.mxu0 0.0
        %621 = vmatpush1.msra.mxu0 0.0
        %622 = vmatprep.subr.mxu0 0.0
        %623 = vmatpush1.msra.mxu0 0.0
        %624 = vmatprep.subr.mxu0 0.0
        %625 = vmatpush1.msra.mxu0 0.0
        %626 = vmatprep.subr.mxu0 0.0
        %627 = vmatpush1.msra.mxu0 0.0
        %628 = vmatprep.subr.mxu0 0.0
        %629 = vmatpush1.msra.mxu0 0.0
        %630 = vmatprep.subr.mxu0 0.0
        %631 = vmatpush1.msra.mxu0 0.0
        %632 = vmatprep.subr.mxu0 0.0
        %633 = vmatpush1.msra.mxu0 0.0
        %634 = vmatprep.subr.mxu0 0.0
        %635 = vmatpush1.msra.mxu0 0.0
        %636 = vmatprep.subr.mxu0 0.0
        %637 = vmatpush1.msra.mxu0 0.0
        %638 = vmatprep.subr.mxu0 0.0
        %639 = vmatpush1.msra.mxu0 0.0
        %640 = vmatprep.subr.mxu0 0.0
        %641 = vmatpush1.msra.mxu0 0.0
        %642 = vmatprep.subr.mxu0 0.0
        %643 = vmatpush1.msra.mxu0 0.0
        %644 = vmatprep.subr.mxu0 0.0
        %645 = vmatpush1.msra.mxu0 0.0
        %646 = vmatprep.subr.mxu0 0.0
        %647 = vmatpush1.msra.mxu0 0.0
        %648 = vmatprep.subr.mxu0 0.0
        %649 = vmatpush1.msra.mxu0 0.0
        %650 = vmatprep.subr.mxu0 0.0
        %651 = vmatpush1.msra.mxu0 0.0
        %652 = vmatprep.subr.mxu0 0.0
        %653 = vmatpush1.msra.mxu0 0.0
        %654 = vmatprep.subr.mxu0 0.0
        %655 = vmatpush1.msra.mxu0 0.0
        %656 = vmatprep.subr.mxu0 0.0
        %657 = vmatpush1.msra.mxu0 0.0
        %658 = vmatprep.subr.mxu0 0.0
        %659 = vmatpush1.msra.mxu0 0.0
        %660 = vmatprep.subr.mxu0 0.0
        %661 = vmatpush1.msra.mxu0 0.0
        %662 = vmatprep.subr.mxu0 0.0
        %663 = vmatpush1.msra.mxu0 0.0
        %664 = vmatprep.subr.mxu0 0.0
        %665 = vmatpush1.msra.mxu0 0.0
        %666 = vmatprep.subr.mxu0 0.0
        %667 = vmatpush1.msra.mxu0 0.0
        %668 = vmatprep.mubr.f32.mxu0 0.0
        %669 = vmatmul.mubr.f32.gmra.mrb[0].mxu0 %v602
        %v670 = vpop.f32.mrb[0].mxu0
        %v671 = vadd.f32 %v600, %v670
        %v672 = vpop.f32.mrb[0].mxu0
        %673 = vdwg.mxu0
        %v674 = vtanh.pop %v671
        %v675 = vld [vmem:[%s6] sm:$0xff]
        %v676 = vld [vmem:[%s6 + $0x8] sm:$0xff]
        %v677 = vld [vmem:[%s6 + $0x10] sm:$0xff]
        %v678 = vld [vmem:[%s6 + $0x18] sm:$0xff]
        %v680 = vsel %vm520, %v674, 0
        %682 = vmatprep.subr.mxu0 0.0
        %683 = vmatpush1.msra.mxu0 %v675
        %684 = vmatprep.subr.mxu0 0.0
        %685 = vmatpush1.msra.mxu0 %v676
        %686 = vmatprep.subr.mxu0 0.0
        %687 = vmatpush1.msra.mxu0 %v677
        %688 = vmatprep.subr.mxu0 0.0
        %689 = vmatpush1.msra.mxu0 %v678
        %690 = vmatprep.subr.mxu0 0.0
        %691 = vmatpush1.msra.mxu0 0.0
        %692 = vmatprep.subr.mxu0 0.0
        %693 = vmatpush1.msra.mxu0 0.0
        %694 = vmatprep.subr.mxu0 0.0
        %695 = vmatpush1.msra.mxu0 0.0
        %696 = vmatprep.subr.mxu0 0.0
        %697 = vmatpush1.msra.mxu0 0.0
        %698 = vmatprep.subr.mxu0 0.0
        %699 = vmatpush1.msra.mxu0 0.0
        %700 = vmatprep.subr.mxu0 0.0
        %701 = vmatpush1.msra.mxu0 0.0
        %702 = vmatprep.subr.mxu0 0.0
        %703 = vmatpush1.msra.mxu0 0.0
        %704 = vmatprep.subr.mxu0 0.0
        %705 = vmatpush1.msra.mxu0 0.0
        %706 = vmatprep.subr.mxu0 0.0
        %707 = vmatpush1.msra.mxu0 0.0
        %708 = vmatprep.subr.mxu0 0.0
        %709 = vmatpush1.msra.mxu0 0.0
        %710 = vmatprep.subr.mxu0 0.0
        %711 = vmatpush1.msra.mxu0 0.0
        %712 = vmatprep.subr.mxu0 0.0
        %713 = vmatpush1.msra.mxu0 0.0
        %714 = vmatprep.subr.mxu0 0.0
        %715 = vmatpush1.msra.mxu0 0.0
        %716 = vmatprep.subr.mxu0 0.0
        %717 = vmatpush1.msra.mxu0 0.0
        %718 = vmatprep.subr.mxu0 0.0
        %719 = vmatpush1.msra.mxu0 0.0
        %720 = vmatprep.subr.mxu0 0.0
        %721 = vmatpush1.msra.mxu0 0.0
        %722 = vmatprep.subr.mxu0 0.0
        %723 = vmatpush1.msra.mxu0 0.0
        %724 = vmatprep.subr.mxu0 0.0
        %725 = vmatpush1.msra.mxu0 0.0
        %726 = vmatprep.subr.mxu0 0.0
        %727 = vmatpush1.msra.mxu0 0.0
        %728 = vmatprep.subr.mxu0 0.0
        %729 = vmatpush1.msra.mxu0 0.0
        %730 = vmatprep.subr.mxu0 0.0
        %731 = vmatpush1.msra.mxu0 0.0
        %732 = vmatprep.subr.mxu0 0.0
        %733 = vmatpush1.msra.mxu0 0.0
        %734 = vmatprep.subr.mxu0 0.0
        %735 = vmatpush1.msra.mxu0 0.0
        %736 = vmatprep.subr.mxu0 0.0
        %737 = vmatpush1.msra.mxu0 0.0
        %738 = vmatprep.subr.mxu0 0.0
        %739 = vmatpush1.msra.mxu0 0.0
        %740 = vmatprep.subr.mxu0 0.0
        %741 = vmatpush1.msra.mxu0 0.0
        %742 = vmatprep.subr.mxu0 0.0
        %743 = vmatpush1.msra.mxu0 0.0
        %744 = vmatprep.subr.mxu0 0.0
        %745 = vmatpush1.msra.mxu0 0.0
        %746 = vmatprep.mubr.f32.mxu0 0.0
        %747 = vmatmul.mubr.f32.gmra.mrb[0].mxu0 %v680
        %v748 = vpop.f32.mrb[0].mxu0
        %v749 = vadd.f32 0.0, %v748
        %v750 = vpop.f32.mrb[0].mxu0
        %751 = vdwg.mxu0
        %vm752 = vcmask 7168
        %v753 = vsel %vm752, %v749, -inf
        %v754 = vrot.slane %v753, 4
        %v755 = vmax.f32 %v753, %v754
        %v756 = vrot.slane %v755, 2
        %v757 = vmax.f32 %v755, %v756
        %v758 = vrot.slane %v757, 1
        %v759 = vmax.f32 %v757, %v758
        %v760 = vsub.f32 %v749, %v759
        %v761 = vmul.f32 %v760, 1.442695
        %v762 = vpow.pop %v761
        %v763 = vsel %vm752, %v762, 0.0
        %v764 = vrot.slane %v763, 4
        %v765 = vadd.f32 %v763, %v764
        %v766 = vrot.slane %v765, 2
        %v767 = vadd.f32 %v765, %v766
        %v768 = vrot.slane %v767, 1
        %v769 = vadd.f32 %v767, %v768
        %v770 = vrcp.pop %v769
        %v771 = vmul.f32 1.0, %v770
        %v772 = vmul.f32 %v762, %v771
        %v773 = vmul.f32 %v772, %v433
        %775 = vset.pattern.permute.xlu0 0
        %776 = vperm.xlu0 %775, %v773
        %v777 = vpop.permute.xlu0 %776
        %v779 = vmul.f32 %v777, %v432
        %v780 = vsel %vm520, %v779, 0.0
        %v781 = vrot.slane %v780, 4
        %v782 = vadd.f32 %v780, %v781
        %v783 = vrot.slane %v782, 2
        %v784 = vadd.f32 %v782, %v783
        %v785 = vrot.slane %v784, 1
        %v786 = vadd.f32 %v784, %v785
        %v787 = vsel %vm752, %v433, 0.0
        %v788 = vrot.slane %v787, 4
        %v789 = vadd.f32 %v787, %v788
        %v790 = vrot.slane %v789, 2
        %v791 = vadd.f32 %v789, %v790
        %v792 = vrot.slane %v791, 1
        %v793 = vadd.f32 %v791, %v792
        %v794 = vrcp.pop %v793
        %v795 = vmul.f32 1.0, %v794
        %797 = vset.pattern.permute.xlu0 0
        %798 = vperm.xlu0 %797, %v795
        %v799 = vpop.permute.xlu0 %798
        %v801 = vmul.f32 %v786, %v799
        %v802 = vld [vmem:[#allocation8] sm:$0xff]
        %v803 = vld [vmem:[#allocation8 + $0x8] sm:$0xff]
        %v804 = vld [vmem:[#allocation8 + $0x10] sm:$0xff]
        %v805 = vld [vmem:[#allocation8 + $0x18] sm:$0xff]
        %v806 = vld [vmem:[#allocation8 + $0x20] sm:$0xff]
        %v807 = vld [vmem:[#allocation8 + $0x28] sm:$0xff]
        %v808 = vld [vmem:[#allocation8 + $0x30] sm:$0xff]
        %v809 = vld [vmem:[#allocation8 + $0x38] sm:$0xff]
        %v810 = vld [vmem:[#allocation8 + $0x40] sm:$0xff]
        %v811 = vld [vmem:[#allocation8 + $0x48] sm:$0xff]
        %v812 = vld [vmem:[#allocation8 + $0x50] sm:$0xff]
        %v813 = vld [vmem:[#allocation8 + $0x58] sm:$0xff]
        %v815 = vsel %vm520, %v801, 0
        %817 = vmatprep.subr.mxu0 %v803
        %818 = vmatpush1.msra.mxu0 %v802
        %819 = vmatprep.subr.mxu0 %v806
        %820 = vmatpush1.msra.mxu0 %v805
        %821 = vmatprep.subr.mxu0 %v809
        %822 = vmatpush1.msra.mxu0 %v808
        %823 = vmatprep.subr.mxu0 %v812
        %824 = vmatpush1.msra.mxu0 %v811
        %825 = vmatprep.subr.mxu0 0.0
        %826 = vmatpush1.msra.mxu0 0.0
        %827 = vmatprep.subr.mxu0 0.0
        %828 = vmatpush1.msra.mxu0 0.0
        %829 = vmatprep.subr.mxu0 0.0
        %830 = vmatpush1.msra.mxu0 0.0
        %831 = vmatprep.subr.mxu0 0.0
        %832 = vmatpush1.msra.mxu0 0.0
        %833 = vmatprep.subr.mxu0 0.0
        %834 = vmatpush1.msra.mxu0 0.0
        %835 = vmatprep.subr.mxu0 0.0
        %836 = vmatpush1.msra.mxu0 0.0
        %837 = vmatprep.subr.mxu0 0.0
        %838 = vmatpush1.msra.mxu0 0.0
        %839 = vmatprep.subr.mxu0 0.0
        %840 = vmatpush1.msra.mxu0 0.0
        %841 = vmatprep.subr.mxu0 0.0
        %842 = vmatpush1.msra.mxu0 0.0
        %843 = vmatprep.subr.mxu0 0.0
        %844 = vmatpush1.msra.mxu0 0.0
        %845 = vmatprep.subr.mxu0 0.0
        %846 = vmatpush1.msra.mxu0 0.0
        %847 = vmatprep.subr.mxu0 0.0
        %848 = vmatpush1.msra.mxu0 0.0
        %849 = vmatprep.subr.mxu0 0.0
        %850 = vmatpush1.msra.mxu0 0.0
        %851 = vmatprep.subr.mxu0 0.0
        %852 = vmatpush1.msra.mxu0 0.0
        %853 = vmatprep.subr.mxu0 0.0
        %854 = vmatpush1.msra.mxu0 0.0
        %855 = vmatprep.subr.mxu0 0.0
        %856 = vmatpush1.msra.mxu0 0.0
        %857 = vmatprep.subr.mxu0 0.0
        %858 = vmatpush1.msra.mxu0 0.0
        %859 = vmatprep.subr.mxu0 0.0
        %860 = vmatpush1.msra.mxu0 0.0
        %861 = vmatprep.subr.mxu0 0.0
        %862 = vmatpush1.msra.mxu0 0.0
        %863 = vmatprep.subr.mxu0 0.0
        %864 = vmatpush1.msra.mxu0 0.0
        %865 = vmatprep.subr.mxu0 0.0
        %866 = vmatpush1.msra.mxu0 0.0
        %867 = vmatprep.subr.mxu0 0.0
        %868 = vmatpush1.msra.mxu0 0.0
        %869 = vmatprep.subr.mxu0 0.0
        %870 = vmatpush1.msra.mxu0 0.0
        %871 = vmatprep.subr.mxu0 0.0
        %872 = vmatpush1.msra.mxu0 0.0
        %873 = vmatprep.subr.mxu0 0.0
        %874 = vmatpush1.msra.mxu0 0.0
        %875 = vmatprep.subr.mxu0 0.0
        %876 = vmatpush1.msra.mxu0 0.0
        %877 = vmatprep.subr.mxu0 0.0
        %878 = vmatpush1.msra.mxu0 0.0
        %879 = vmatprep.subr.mxu0 0.0
        %880 = vmatpush1.msra.mxu0 0.0
        %881 = vmatprep.mubr.f32.mxu0 0.0
        %882 = vmatmul.mubr.f32.gmra.mrb[0].mxu0 %v815
        %v883 = vpop.f32.mrb[0].mxu0
        %v884 = vadd.f32 0.0, %v883
        %v885 = vpop.f32.mrb[0].mxu0
        %v886 = vadd.f32 0.0, %v885
        %887 = vdwg.mxu0
        %888 = vmatprep.subr.mxu0 0.0
        %889 = vmatpush1.msra.mxu0 %v804
        %890 = vmatprep.subr.mxu0 0.0
        %891 = vmatpush1.msra.mxu0 %v807
        %892 = vmatprep.subr.mxu0 0.0
        %893 = vmatpush1.msra.mxu0 %v810
        %894 = vmatprep.subr.mxu0 0.0
        %895 = vmatpush1.msra.mxu0 %v813
        %896 = vmatprep.subr.mxu0 0.0
        %897 = vmatpush1.msra.mxu0 0.0
        %898 = vmatprep.subr.mxu0 0.0
        %899 = vmatpush1.msra.mxu0 0.0
        %900 = vmatprep.subr.mxu0 0.0
        %901 = vmatpush1.msra.mxu0 0.0
        %902 = vmatprep.subr.mxu0 0.0
        %903 = vmatpush1.msra.mxu0 0.0
        %904 = vmatprep.subr.mxu0 0.0
        %905 = vmatpush1.msra.mxu0 0.0
        %906 = vmatprep.subr.mxu0 0.0
        %907 = vmatpush1.msra.mxu0 0.0
        %908 = vmatprep.subr.mxu0 0.0
        %909 = vmatpush1.msra.mxu0 0.0
        %910 = vmatprep.subr.mxu0 0.0
        %911 = vmatpush1.msra.mxu0 0.0
        %912 = vmatprep.subr.mxu0 0.0
        %913 = vmatpush1.msra.mxu0 0.0
        %914 = vmatprep.subr.mxu0 0.0
        %915 = vmatpush1.msra.mxu0 0.0
        %916 = vmatprep.subr.mxu0 0.0
        %917 = vmatpush1.msra.mxu0 0.0
        %918 = vmatprep.subr.mxu0 0.0
        %919 = vmatpush1.msra.mxu0 0.0
        %920 = vmatprep.subr.mxu0 0.0
        %921 = vmatpush1.msra.mxu0 0.0
        %922 = vmatprep.subr.mxu0 0.0
        %923 = vmatpush1.msra.mxu0 0.0
        %924 = vmatprep.subr.mxu0 0.0
        %925 = vmatpush1.msra.mxu0 0.0
        %926 = vmatprep.subr.mxu0 0.0
        %927 = vmatpush1.msra.mxu0 0.0
        %928 = vmatprep.subr.mxu0 0.0
        %929 = vmatpush1.msra.mxu0 0.0
        %930 = vmatprep.subr.mxu0 0.0
        %931 = vmatpush1.msra.mxu0 0.0
        %932 = vmatprep.subr.mxu0 0.0
        %933 = vmatpush1.msra.mxu0 0.0
        %934 = vmatprep.subr.mxu0 0.0
        %935 = vmatpush1.msra.mxu0 0.0
        %936 = vmatprep.subr.mxu0 0.0
        %937 = vmatpush1.msra.mxu0 0.0
        %938 = vmatprep.subr.mxu0 0.0
        %939 = vmatpush1.msra.mxu0 0.0
        %940 = vmatprep.subr.mxu0 0.0
        %941 = vmatpush1.msra.mxu0 0.0
        %942 = vmatprep.subr.mxu0 0.0
        %943 = vmatpush1.msra.mxu0 0.0
        %944 = vmatprep.subr.mxu0 0.0
        %945 = vmatpush1.msra.mxu0 0.0
        %946 = vmatprep.subr.mxu0 0.0
        %947 = vmatpush1.msra.mxu0 0.0
        %948 = vmatprep.subr.mxu0 0.0
        %949 = vmatpush1.msra.mxu0 0.0
        %950 = vmatprep.subr.mxu0 0.0
        %951 = vmatpush1.msra.mxu0 0.0
        %952 = vmatprep.mubr.f32.mxu0 0.0
        %953 = vmatmul.mubr.f32.gmra.mrb[0].mxu0 %v815
        %v954 = vpop.f32.mrb[0].mxu0
        %v955 = vadd.f32 0.0, %v954
        %v956 = vpop.f32.mrb[0].mxu0
        %957 = vdwg.mxu0
        %v958 = vld [vmem:[#allocation10] sm:$0xff]
        %v959 = vld [vmem:[#allocation10 + $0x8] sm:$0xff]
        %v960 = vld [vmem:[#allocation10 + $0x10] sm:$0xff]
        %v961 = vld [vmem:[#allocation10 + $0x18] sm:$0xff]
        %v962 = vld [vmem:[#allocation10 + $0x20] sm:$0xff]
        %v963 = vld [vmem:[#allocation10 + $0x28] sm:$0xff]
        %v964 = vld [vmem:[#allocation10 + $0x30] sm:$0xff]
        %v965 = vld [vmem:[#allocation10 + $0x38] sm:$0xff]
        %v966 = vld [vmem:[#allocation10 + $0x40] sm:$0xff]
        %v967 = vld [vmem:[#allocation10 + $0x48] sm:$0xff]
        %v968 = vld [vmem:[#allocation10 + $0x50] sm:$0xff]
        %v969 = vld [vmem:[#allocation10 + $0x58] sm:$0xff]
        %v970 = vld [vmem:[#allocation10 + $0x60] sm:$0xff]
        %v971 = vld [vmem:[#allocation10 + $0x68] sm:$0xff]
        %v972 = vld [vmem:[#allocation10 + $0x70] sm:$0xff]
        %v973 = vld [vmem:[#allocation10 + $0x78] sm:$0xff]
        %v974 = vld [vmem:[#allocation10 + $0x80] sm:$0xff]
        %v975 = vld [vmem:[#allocation10 + $0x88] sm:$0xff]
        %v976 = vld [vmem:[#allocation10 + $0x90] sm:$0xff]
        %v977 = vld [vmem:[#allocation10 + $0x98] sm:$0xff]
        %v978 = vld [vmem:[#allocation10 + $0xa0] sm:$0xff]
        %v979 = vld [vmem:[#allocation10 + $0xa8] sm:$0xff]
        %v980 = vld [vmem:[#allocation10 + $0xb0] sm:$0xff]
        %v981 = vld [vmem:[#allocation10 + $0xb8] sm:$0xff]
        %v982 = vld [vmem:[#allocation10 + $0xc0] sm:$0xff]
        %v983 = vld [vmem:[#allocation10 + $0xc8] sm:$0xff]
        %v984 = vld [vmem:[#allocation10 + $0xd0] sm:$0xff]
        %v985 = vld [vmem:[#allocation10 + $0xd8] sm:$0xff]
        %v986 = vld [vmem:[#allocation10 + $0xe0] sm:$0xff]
        %v987 = vld [vmem:[#allocation10 + $0xe8] sm:$0xff]
        %v988 = vld [vmem:[#allocation10 + $0xf0] sm:$0xff]
        %v989 = vld [vmem:[#allocation10 + $0xf8] sm:$0xff]
        %v990 = vld [vmem:[#allocation10 + $0x100] sm:$0xff]
        %v991 = vld [vmem:[#allocation10 + $0x108] sm:$0xff]
        %v992 = vld [vmem:[#allocation10 + $0x110] sm:$0xff]
        %v993 = vld [vmem:[#allocation10 + $0x118] sm:$0xff]
        %v994 = vld [vmem:[#allocation10 + $0x120] sm:$0xff]
        %v995 = vld [vmem:[#allocation10 + $0x128] sm:$0xff]
        %v996 = vld [vmem:[#allocation10 + $0x130] sm:$0xff]
        %v997 = vld [vmem:[#allocation10 + $0x138] sm:$0xff]
        %v998 = vld [vmem:[#allocation10 + $0x140] sm:$0xff]
        %v999 = vld [vmem:[#allocation10 + $0x148] sm:$0xff]
        %v1000 = vld [vmem:[#allocation10 + $0x150] sm:$0xff]
        %v1001 = vld [vmem:[#allocation10 + $0x158] sm:$0xff]
        %v1002 = vld [vmem:[#allocation10 + $0x160] sm:$0xff]
        %v1003 = vld [vmem:[#allocation10 + $0x168] sm:$0xff]
        %v1004 = vld [vmem:[#allocation10 + $0x170] sm:$0xff]
        %v1005 = vld [vmem:[#allocation10 + $0x178] sm:$0xff]
        %1006 = vmatprep.subr.mxu0 %v959
        %1007 = vmatpush1.msra.mxu0 %v958
        %1008 = vmatprep.subr.mxu0 %v962
        %1009 = vmatpush1.msra.mxu0 %v961
        %1010 = vmatprep.subr.mxu0 %v965
        %1011 = vmatpush1.msra.mxu0 %v964
        %1012 = vmatprep.subr.mxu0 %v968
        %1013 = vmatpush1.msra.mxu0 %v967
        %1014 = vmatprep.subr.mxu0 %v971
        %1015 = vmatpush1.msra.mxu0 %v970
        %1016 = vmatprep.subr.mxu0 %v974
        %1017 = vmatpush1.msra.mxu0 %v973
        %1018 = vmatprep.subr.mxu0 %v977
        %1019 = vmatpush1.msra.mxu0 %v976
        %1020 = vmatprep.subr.mxu0 %v980
        %1021 = vmatpush1.msra.mxu0 %v979
        %1022 = vmatprep.subr.mxu0 %v983
        %1023 = vmatpush1.msra.mxu0 %v982
        %1024 = vmatprep.subr.mxu0 %v986
        %1025 = vmatpush1.msra.mxu0 %v985
        %1026 = vmatprep.subr.mxu0 %v989
        %1027 = vmatpush1.msra.mxu0 %v988
        %1028 = vmatprep.subr.mxu0 %v992
        %1029 = vmatpush1.msra.mxu0 %v991
        %1030 = vmatprep.subr.mxu0 %v995
        %1031 = vmatpush1.msra.mxu0 %v994
        %1032 = vmatprep.subr.mxu0 %v998
        %1033 = vmatpush1.msra.mxu0 %v997
        %1034 = vmatprep.subr.mxu0 %v1001
        %1035 = vmatpush1.msra.mxu0 %v1000
        %1036 = vmatprep.subr.mxu0 %v1004
        %1037 = vmatpush1.msra.mxu0 %v1003
        %1038 = vmatprep.subr.mxu0 0.0
        %1039 = vmatpush1.msra.mxu0 0.0
        %1040 = vmatprep.subr.mxu0 0.0
        %1041 = vmatpush1.msra.mxu0 0.0
        %1042 = vmatprep.subr.mxu0 0.0
        %1043 = vmatpush1.msra.mxu0 0.0
        %1044 = vmatprep.subr.mxu0 0.0
        %1045 = vmatpush1.msra.mxu0 0.0
        %1046 = vmatprep.subr.mxu0 0.0
        %1047 = vmatpush1.msra.mxu0 0.0
        %1048 = vmatprep.subr.mxu0 0.0
        %1049 = vmatpush1.msra.mxu0 0.0
        %1050 = vmatprep.subr.mxu0 0.0
        %1051 = vmatpush1.msra.mxu0 0.0
        %1052 = vmatprep.subr.mxu0 0.0
        %1053 = vmatpush1.msra.mxu0 0.0
        %1054 = vmatprep.subr.mxu0 0.0
        %1055 = vmatpush1.msra.mxu0 0.0
        %1056 = vmatprep.subr.mxu0 0.0
        %1057 = vmatpush1.msra.mxu0 0.0
        %1058 = vmatprep.subr.mxu0 0.0
        %1059 = vmatpush1.msra.mxu0 0.0
        %1060 = vmatprep.subr.mxu0 0.0
        %1061 = vmatpush1.msra.mxu0 0.0
        %1062 = vmatprep.subr.mxu0 0.0
        %1063 = vmatpush1.msra.mxu0 0.0
        %1064 = vmatprep.subr.mxu0 0.0
        %1065 = vmatpush1.msra.mxu0 0.0
        %1066 = vmatprep.subr.mxu0 0.0
        %1067 = vmatpush1.msra.mxu0 0.0
        %1068 = vmatprep.subr.mxu0 0.0
        %1069 = vmatpush1.msra.mxu0 0.0
        %1070 = vmatprep.mubr.f32.mxu0 0.0
        %1071 = vmatmul.mubr.f32.gmra.mrb[0].mxu0 %v590
        %v1072 = vpop.f32.mrb[0].mxu0
        %v1073 = vadd.f32 0.0, %v1072
        %v1074 = vpop.f32.mrb[0].mxu0
        %v1075 = vadd.f32 0.0, %v1074
        %1076 = vdwg.mxu0
        %1077 = vmatprep.subr.mxu0 0.0
        %1078 = vmatpush1.msra.mxu0 %v960
        %1079 = vmatprep.subr.mxu0 0.0
        %1080 = vmatpush1.msra.mxu0 %v963
        %1081 = vmatprep.subr.mxu0 0.0
        %1082 = vmatpush1.msra.mxu0 %v966
        %1083 = vmatprep.subr.mxu0 0.0
        %1084 = vmatpush1.msra.mxu0 %v969
        %1085 = vmatprep.subr.mxu0 0.0
        %1086 = vmatpush1.msra.mxu0 %v972
        %1087 = vmatprep.subr.mxu0 0.0
        %1088 = vmatpush1.msra.mxu0 %v975
        %1089 = vmatprep.subr.mxu0 0.0
        %1090 = vmatpush1.msra.mxu0 %v978
        %1091 = vmatprep.subr.mxu0 0.0
        %1092 = vmatpush1.msra.mxu0 %v981
        %1093 = vmatprep.subr.mxu0 0.0
        %1094 = vmatpush1.msra.mxu0 %v984
        %1095 = vmatprep.subr.mxu0 0.0
        %1096 = vmatpush1.msra.mxu0 %v987
        %1097 = vmatprep.subr.mxu0 0.0
        %1098 = vmatpush1.msra.mxu0 %v990
        %1099 = vmatprep.subr.mxu0 0.0
        %1100 = vmatpush1.msra.mxu0 %v993
        %1101 = vmatprep.subr.mxu0 0.0
        %1102 = vmatpush1.msra.mxu0 %v996
        %1103 = vmatprep.subr.mxu0 0.0
        %1104 = vmatpush1.msra.mxu0 %v999
        %1105 = vmatprep.subr.mxu0 0.0
        %1106 = vmatpush1.msra.mxu0 %v1002
        %1107 = vmatprep.subr.mxu0 0.0
        %1108 = vmatpush1.msra.mxu0 %v1005
        %1109 = vmatprep.subr.mxu0 0.0
        %1110 = vmatpush1.msra.mxu0 0.0
        %1111 = vmatprep.subr.mxu0 0.0
        %1112 = vmatpush1.msra.mxu0 0.0
        %1113 = vmatprep.subr.mxu0 0.0
        %1114 = vmatpush1.msra.mxu0 0.0
        %1115 = vmatprep.subr.mxu0 0.0
        %1116 = vmatpush1.msra.mxu0 0.0
        %1117 = vmatprep.subr.mxu0 0.0
        %1118 = vmatpush1.msra.mxu0 0.0
        %1119 = vmatprep.subr.mxu0 0.0
        %1120 = vmatpush1.msra.mxu0 0.0
        %1121 = vmatprep.subr.mxu0 0.0
        %1122 = vmatpush1.msra.mxu0 0.0
        %1123 = vmatprep.subr.mxu0 0.0
        %1124 = vmatpush1.msra.mxu0 0.0
        %1125 = vmatprep.subr.mxu0 0.0
        %1126 = vmatpush1.msra.mxu0 0.0
        %1127 = vmatprep.subr.mxu0 0.0
        %1128 = vmatpush1.msra.mxu0 0.0
        %1129 = vmatprep.subr.mxu0 0.0
        %1130 = vmatpush1.msra.mxu0 0.0
        %1131 = vmatprep.subr.mxu0 0.0
        %1132 = vmatpush1.msra.mxu0 0.0
        %1133 = vmatprep.subr.mxu0 0.0
        %1134 = vmatpush1.msra.mxu0 0.0
        %1135 = vmatprep.subr.mxu0 0.0
        %1136 = vmatpush1.msra.mxu0 0.0
        %1137 = vmatprep.subr.mxu0 0.0
        %1138 = vmatpush1.msra.mxu0 0.0
        %1139 = vmatprep.subr.mxu0 0.0
        %1140 = vmatpush1.msra.mxu0 0.0
        %1141 = vmatprep.mubr.f32.mxu0 0.0
        %1142 = vmatmul.mubr.f32.gmra.mrb[0].mxu0 %v590
        %v1143 = vpop.f32.mrb[0].mxu0
        %v1144 = vadd.f32 0.0, %v1143
        %v1145 = vpop.f32.mrb[0].mxu0
        %1146 = vdwg.mxu0
        %v1147 = vadd.f32 %v884, %v1073
        %v1148 = vxor.u32 %v1147, 2147483648
        %v1149 = vmul.f32 %v1148, 1.442695
        %v1150 = vpow.pop %v1149
        %v1151 = vadd.f32 %v1150, 1.0
        %v1152 = vrcp.pop %v1151
        %v1153 = vmul.f32 1.0, %v1152
        %v1154 = vadd.f32 %v886, %v1075
        %v1155 = vxor.u32 %v1154, 2147483648
        %v1156 = vmul.f32 %v1155, 1.442695
        %v1157 = vpow.pop %v1156
        %v1158 = vadd.f32 %v1157, 1.0
        %v1159 = vrcp.pop %v1158
        %v1160 = vmul.f32 1.0, %v1159
        %v1161 = vmul.f32 %v1153, %v1144
        %v1162 = vadd.f32 %v955, %v1161
        %v1163 = vtanh.pop %v1162
        %v1164 = vsub.f32 1.0, %v1160
        %v1165 = vmul.f32 %v1164, %v1163
        %v1166 = vmul.f32 %v1160, %v590
        %v1167 = vadd.f32 %v1165, %v1166
        %1168 = vst [vmem:[%s419] sm:$0x1] %v1167
        %s1169 = sand.u32 %s238, 1
        %s1170 = scalar_lea.sflag [#allocation4], %s1169
        %s1171 = sand.u32 %s238, 1
        %s1172 = scalar_lea.vmem [#allocation11], %s1171
        // Predicated region
        $region77: #{forward.1} parent=55 // pred_check
          %p1173 = pneg %p248
        $region78: #{forward.1} parent=55 // pred_check_branch
          %1175 = sbr.rel (%p1173) target = $region80
        $region79: #{forward.1} parent=55 // pred_region
          %s1177 = ssub.s32 16, 16
          %1178 = vsyncadd %s1170, %s1177
          %s1179 = smul.addr %s26, 16
          %s1180 = scalar_lea.hbm %s9, %s1179
          %s1182 = sshll.u32 %s1172, 4
          %s1183 = int_to_ptr.vmem [resolvable:$true] %s1182
          %1185 = dma.vmem_to_hbm [thread:$0]  %s1183, 16, %s1180, %s1170
        $region80: #{forward.1} parent=55 // pred_fallthru
          _
      $region56: #{forward.1} parent=5 // pred_fallthru
        _
      %p1186 = scmp.le.s32.totalorder 2, %s21
      // Predicated region
      $region81: #{forward.1} parent=5 // pred_check
        %p1187 = pneg %p1186
      $region82: #{forward.1} parent=5 // pred_check_branch
        %1189 = sbr.rel (%p1187) target = $region84
      $region83: #{forward.1} parent=5 // pred_region
        %s1190 = ssub.s32 %s21, 2
        // Predicated region
        $region85: #{forward.1} parent=83 // pred_check
          %p1191 = pneg %p254
        $region86: #{forward.1} parent=83 // pred_check_branch
          %1193 = sbr.rel (%p1191) target = $region88
        $region87: #{forward.1} parent=83 // pred_region
          %s1194 = sand.u32 %s239, 1
          %s1195 = scalar_lea.sflag [#allocation4], %s1194
          %s1196 = sand.u32 %s239, 1
          %s1197 = scalar_lea.vmem [#allocation11], %s1196
          %1198 = dma.done %s1195, 16
        $region88: #{forward.1} parent=83 // pred_fallthru
          _
      $region84: #{forward.1} parent=5 // pred_fallthru
        _
    $region6: #{forward.1} parent=1 // loop_footer
      %s25 = sadd.s32 1, %s21
    $region7: #{forward.1} parent=1 // loop_footer_branch
      %20 = sbr.rel target = $region3
    $region8: #{forward.1} parent=1 // loop_exit
      _
    %1199 = vsyncpa [#allocation3], 1
    %s1200 = scalar_lea.sflag [#allocation3], 1
    %1201 = vsyncpa %s1200, 1
    %1202 = vsyncpa [#allocation6], 1
    %1203 = vsyncpa [#allocation9], 1
    %1204 = vsyncpa [#allocation4], 1
    %s1205 = scalar_lea.sflag [#allocation4], 1
    %1206 = vsyncpa %s1205, 1

</llo_original>
